<compile_context>
chip_gen: v6e
topology: v6e:2x2x1
jax: 0.10.0
libtpu: 0.0.40
codegen_flags: <defaults>
</compile_context>

<pallas_src>
import math
import numpy as np
import jax
import jax.numpy as jnp
from jax.experimental import pallas as pl
from jax.experimental.pallas import tpu as pltpu


def _round_up(v, m):
    return (v + m - 1) // m * m


def _gate_head_kernel(patches_ref, w1_ref, b1_ref, pool_ref, w2_ref, b2_ref, z_ref):
    # conv3x3 / stride-2 as an im2col matmul (bf16 operands, f32 accumulation).
    # BN scale is pre-folded into w1; add the folded bias and ReLU.
    y = jnp.dot(patches_ref[...], w1_ref[...], preferred_element_type=jnp.float32)
    y = jnp.maximum(y + b1_ref[...], 0.0)                                   # (HoWo, Cpad) f32
    # AvgPool2d(PK) as a small per-image averaging matmul, shared across the batch grid.
    pooled = jnp.dot(pool_ref[...], y, preferred_element_type=jnp.float32)  # (PoPw, Cpad) f32
    # 1x1 conv ("linear_layer") + bias, output lane-padded to Npad (unmasked stores).
    z_ref[...] = jnp.dot(pooled.astype(w2_ref.dtype), w2_ref[...],
                         preferred_element_type=jnp.float32) + b2_ref[...]


def _log_softmax_axis0_kernel(x_ref, o_ref):
    # log_softmax over axis 0 (legacy implicit dim for the 3-D .view output), applied on a
    # lane-dense (B, PoPw*Npad) layout; the batch reduction is elementwise per position.
    x = x_ref[...]
    m = jnp.max(x, axis=0, keepdims=True)
    z = x - m
    o_ref[...] = z - jnp.log(jnp.sum(jnp.exp(z), axis=0, keepdims=True))


def feedforward_gate_i(x, params, pool_size, out_channels):
    B, C, H, W = x.shape
    eps = 1e-5

    Ho = (H + 2 - 3) // 2 + 1
    Wo = (W + 2 - 3) // 2 + 1
    PK = int(math.floor(pool_size / 2 + 0.5))          # AvgPool2d kernel (== stride)
    Po, Pw = Ho // PK, Wo // PK                        # floor semantics like AvgPool2d
    HoWo, PoPw = Ho * Wo, Po * Pw
    n_lin = 10 * out_channels

    K = 9 * C
    Kpad = _round_up(K, 8)                             # contraction dim, sublane-aligned
    Cpad = _round_up(C, 128)                           # conv-out channels, lane-dense
    Npad = _round_up(n_lin, 128)                       # 1x1-conv out, lane-dense stores

    # --- glue: im2col patches built directly in (b, ho, wo, ky*kx*c) order, bf16 ---
    x_nhwc = jnp.transpose(x, (0, 2, 3, 1))
    xp = jnp.pad(x_nhwc, ((0, 0), (1, 1), (1, 1), (0, 0)))
    cols = [xp[:, ky:ky + 2 * Ho:2, kx:kx + 2 * Wo:2, :]
            for ky in range(3) for kx in range(3)]                      # each (B, Ho, Wo, C)
    patches = jnp.concatenate(cols, axis=-1).reshape(B, HoWo, K)
    patches = jnp.pad(patches, ((0, 0), (0, 0), (0, Kpad - K))).astype(jnp.bfloat16)
    # TODO(synk): for very large gate inputs, accumulate the 9 taps in-kernel from the
    # padded image instead of materializing the 9x patches array in HBM.

    # --- folded conv weights: rows ordered (ky, kx, cin), BN scale folded per cout ---
    sc = params["bn_gamma"] / jnp.sqrt(params["bn_var"] + eps)
    w1 = params["w_conv"].transpose(2, 3, 1, 0).reshape(K, C) * sc[None, :]
    w1 = jnp.pad(w1, ((0, Kpad - K), (0, Cpad - C))).astype(jnp.bfloat16)
    b1 = jnp.pad((params["bn_beta"] - params["bn_mean"] * sc)[None, :],
                 ((0, 0), (0, Cpad - C))).astype(jnp.float32)

    # --- per-image averaging matrix for AvgPool2d(PK), shared across the batch grid ---
    pm = np.zeros((PoPw, HoWo), np.float32)
    for po in range(Po):
        for pw in range(Pw):
            for dy in range(PK):
                for dx in range(PK):
                    pm[po * Pw + pw, (po * PK + dy) * Wo + (pw * PK + dx)] = 1.0 / (PK * PK)
    pool_mat = jnp.asarray(pm)

    # --- 1x1 conv weights / bias, lane-padded with zeros ---
    w2 = params["w_lin"].reshape(n_lin, C).T
    w2 = jnp.pad(w2, ((0, Cpad - C), (0, Npad - n_lin))).astype(jnp.bfloat16)
    b2 = jnp.pad(params["b_lin"][None, :], ((0, 0), (0, Npad - n_lin))).astype(jnp.float32)

    flops = 2 * B * (HoWo * Kpad * Cpad + PoPw * HoWo * Cpad + PoPw * Cpad * Npad)
    bytes_accessed = (B * HoWo * Kpad * 2 + Kpad * Cpad * 2 + Cpad * 4
                      + PoPw * HoWo * 4 + Cpad * Npad * 2 + Npad * 4
                      + B * PoPw * Npad * 4)

    grid_spec = pltpu.PrefetchScalarGridSpec(
        num_scalar_prefetch=0,
        grid=(B,),
        in_specs=[
            pl.BlockSpec((None, HoWo, Kpad), lambda b: (b, 0, 0)),   # per-batch patches tile
            pl.BlockSpec((Kpad, Cpad), lambda b: (0, 0)),            # broadcast weights
            pl.BlockSpec((1, Cpad), lambda b: (0, 0)),
            pl.BlockSpec((PoPw, HoWo), lambda b: (0, 0)),
            pl.BlockSpec((Cpad, Npad), lambda b: (0, 0)),
            pl.BlockSpec((1, Npad), lambda b: (0, 0)),
        ],
        out_specs=pl.BlockSpec((None, PoPw, Npad), lambda b: (b, 0, 0)),
    )

    z = pl.pallas_call(
        _gate_head_kernel,
        out_shape=jax.ShapeDtypeStruct((B, PoPw, Npad), jnp.float32),
        grid_spec=grid_spec,
        compiler_params=pltpu.CompilerParams(
            dimension_semantics=("parallel",),
            vmem_limit_bytes=32 * 1024 * 1024),
        cost_estimate=pl.CostEstimate(flops=flops, transcendentals=0,
                                      bytes_accessed=bytes_accessed),
    )(patches, w1, b1, pool_mat, w2, b2)

    # --- log-softmax over batch on the lane-dense kernel-native layout ---
    z_flat = z.reshape(B, PoPw * Npad)
    lp_flat = pl.pallas_call(
        _log_softmax_axis0_kernel,
        out_shape=jax.ShapeDtypeStruct((B, PoPw * Npad), jnp.float32),
        in_specs=[pl.BlockSpec(memory_space=pltpu.MemorySpace.VMEM)],
        out_specs=pl.BlockSpec(memory_space=pltpu.MemorySpace.VMEM),
    )(z_flat)
    lp = lp_flat.reshape(B, PoPw, Npad)

    # --- glue: strip lane padding, reorder (po,pw)x(c_lin) rows into the torch
    #     NCHW -> .view(B, out_channels, -1) ordering ---
    z_lin = z[:, :, :n_lin]                                             # (B, PoPw, n_lin)
    lp_lin = lp[:, :, :n_lin]
    x3 = jnp.transpose(z_lin, (0, 2, 1)).reshape(B, out_channels, 10 * PoPw)
    logprob = jnp.transpose(lp_lin, (0, 2, 1)).reshape(B, out_channels, 10 * PoPw)
    x5 = x3.reshape(B, out_channels, 10 * PoPw, 1, 1)                   # x.view(B, out, -1, 1, 1)
    return x5, logprob


if __name__ == "__main__":
    B, C, H, W = 2, 4, 16, 16
    out_channels = 4
    pool_size = H // 2   # spatial size after the stride-2 conv, as the module intends

    key = jax.random.PRNGKey(0)
    k = jax.random.split(key, 8)
    x = jax.random.normal(k[0], (B, C, H, W), jnp.float32)
    params = dict(
        w_conv=jax.random.normal(k[1], (C, C, 3, 3), jnp.float32) / math.sqrt(9 * C),
        bn_gamma=jax.random.uniform(k[2], (C,), jnp.float32, 0.5, 1.5),
        bn_beta=jax.random.normal(k[3], (C,), jnp.float32) * 0.1,
        bn_mean=jax.random.normal(k[4], (C,), jnp.float32) * 0.1,
        bn_var=jax.random.uniform(k[5], (C,), jnp.float32, 0.5, 1.5),
        w_lin=jax.random.normal(k[6], (10 * out_channels, C, 1, 1), jnp.float32) / math.sqrt(C),
        b_lin=jax.random.normal(k[7], (10 * out_channels,), jnp.float32) * 0.1,
    )

    x5, logprob = feedforward_gate_i(x, params, pool_size, out_channels)
    jax.block_until_ready((x5, logprob))

    # --- pure-JAX f32 reference check (kernel uses bf16 MXU operands -> loose tolerance) ---
    eps = 1e-5
    y = jax.lax.conv_general_dilated(x, params["w_conv"], (2, 2), ((1, 1), (1, 1)),
                                     dimension_numbers=("NCHW", "OIHW", "NCHW"))
    sc = params["bn_gamma"] / jnp.sqrt(params["bn_var"] + eps)
    y = y * sc[None, :, None, None] + (params["bn_beta"] - params["bn_mean"] * sc)[None, :, None, None]
    y = jnp.maximum(y, 0.0)
    PK = int(math.floor(pool_size / 2 + 0.5))
    Ho_r = y.shape[2]
    y = y.reshape(B, C, Ho_r // PK, PK, Ho_r // PK, PK).mean(axis=(3, 5))
    z_ref = jax.lax.conv_general_dilated(y, params["w_lin"], (1, 1), "VALID",
                                         dimension_numbers=("NCHW", "OIHW", "NCHW"))
    z_ref = z_ref + params["b_lin"][None, :, None, None]
    x3_ref = z_ref.reshape(B, out_channels, -1)
    lp_ref = jax.nn.log_softmax(x3_ref, axis=0)

    np.testing.assert_allclose(np.asarray(x5[..., 0, 0]), np.asarray(x3_ref), rtol=5e-2, atol=5e-2)
    np.testing.assert_allclose(np.asarray(logprob), np.asarray(lp_ref), rtol=5e-2, atol=5e-2)

    print("KERNEL_OK")
</pallas_src>

<mosaic_0001>
module attributes {stable_mosaic.version = 11 : i64} {
  func.func @_gate_head_kernel(%arg0: i32, %arg1: memref<1x64x40xbf16, #tpu.memory_space<vmem>>, %arg2: memref<40x128xbf16, #tpu.memory_space<vmem>>, %arg3: memref<1x128xf32, #tpu.memory_space<vmem>>, %arg4: memref<4x64xf32, #tpu.memory_space<vmem>>, %arg5: memref<128x128xbf16, #tpu.memory_space<vmem>>, %arg6: memref<1x128xf32, #tpu.memory_space<vmem>>, %arg7: memref<1x4x128xf32, #tpu.memory_space<vmem>>) attributes {dimension_semantics = [#tpu.dimension_semantics<parallel>], iteration_bounds = array<i64: 2>, scalar_prefetch = 0 : i64, scratch_operands = 0 : i64, tpu.core_type = #tpu.core_type<tc>, window_params = [{transform_indices = @transform_0, window_bounds = array<i64: 1, 64, 40>}, {pipeline_mode = #tpu.pipeline_mode<synchronous>, transform_indices = @transform_1, window_bounds = array<i64: 40, 128>}, {pipeline_mode = #tpu.pipeline_mode<synchronous>, transform_indices = @transform_2, window_bounds = array<i64: 1, 128>}, {pipeline_mode = #tpu.pipeline_mode<synchronous>, transform_indices = @transform_3, window_bounds = array<i64: 4, 64>}, {pipeline_mode = #tpu.pipeline_mode<synchronous>, transform_indices = @transform_4, window_bounds = array<i64: 128, 128>}, {pipeline_mode = #tpu.pipeline_mode<synchronous>, transform_indices = @transform_5, window_bounds = array<i64: 1, 128>}, {transform_indices = @transform_6, window_bounds = array<i64: 1, 4, 128>}]} {
    %c0 = arith.constant 0 : index
    %c0_0 = arith.constant 0 : index
    %c0_1 = arith.constant 0 : index
    %0 = vector.load %arg1[%c0, %c0_0, %c0_1] : memref<1x64x40xbf16, #tpu.memory_space<vmem>>, vector<1x64x40xbf16>
    %1 = vector.shape_cast %0 : vector<1x64x40xbf16> to vector<64x40xbf16>
    %c0_2 = arith.constant 0 : index
    %c0_3 = arith.constant 0 : index
    %2 = vector.load %arg2[%c0_2, %c0_3] : memref<40x128xbf16, #tpu.memory_space<vmem>>, vector<40x128xbf16>
    %cst = arith.constant dense<0.000000e+00> : vector<64x128xf32>
    %3 = tpu.matmul %1, %2, %cst {dimension_numbers = #tpu.dot_dimension_numbers<[1], [0], [0], [1], [0, 0, 1, 1], [], []>} : vector<64x40xbf16>, vector<40x128xbf16>, vector<64x128xf32> -> vector<64x128xf32>
    %c0_4 = arith.constant 0 : index
    %c0_5 = arith.constant 0 : index
    %4 = vector.load %arg3[%c0_4, %c0_5] : memref<1x128xf32, #tpu.memory_space<vmem>>, vector<1x128xf32>
    %5 = vector.broadcast %4 : vector<1x128xf32> to vector<64x128xf32>
    %6 = arith.addf %3, %5 : vector<64x128xf32>
    %cst_6 = arith.constant 0.000000e+00 : f32
    %7 = vector.broadcast %cst_6 : f32 to vector<64x128xf32>
    %8 = arith.maximumf %6, %7 : vector<64x128xf32>
    %c0_7 = arith.constant 0 : index
    %c0_8 = arith.constant 0 : index
    %9 = vector.load %arg4[%c0_7, %c0_8] : memref<4x64xf32, #tpu.memory_space<vmem>>, vector<4x64xf32>
    %cst_9 = arith.constant dense<0.000000e+00> : vector<4x128xf32>
    %10 = tpu.matmul %9, %8, %cst_9 {dimension_numbers = #tpu.dot_dimension_numbers<[1], [0], [0], [1], [0, 0, 1, 1], [], []>} : vector<4x64xf32>, vector<64x128xf32>, vector<4x128xf32> -> vector<4x128xf32>
    %11 = arith.truncf %10 : vector<4x128xf32> to vector<4x128xbf16>
    %c0_10 = arith.constant 0 : index
    %c0_11 = arith.constant 0 : index
    %12 = vector.load %arg5[%c0_10, %c0_11] : memref<128x128xbf16, #tpu.memory_space<vmem>>, vector<128x128xbf16>
    %cst_12 = arith.constant dense<0.000000e+00> : vector<4x128xf32>
    %13 = tpu.matmul %11, %12, %cst_12 {dimension_numbers = #tpu.dot_dimension_numbers<[1], [0], [0], [1], [0, 0, 1, 1], [], []>} : vector<4x128xbf16>, vector<128x128xbf16>, vector<4x128xf32> -> vector<4x128xf32>
    %c0_13 = arith.constant 0 : index
    %c0_14 = arith.constant 0 : index
    %14 = vector.load %arg6[%c0_13, %c0_14] : memref<1x128xf32, #tpu.memory_space<vmem>>, vector<1x128xf32>
    %15 = vector.broadcast %14 : vector<1x128xf32> to vector<4x128xf32>
    %16 = arith.addf %13, %15 : vector<4x128xf32>
    %c0_15 = arith.constant 0 : index
    %c0_16 = arith.constant 0 : index
    %c0_17 = arith.constant 0 : index
    %17 = vector.load %arg7[%c0_15, %c0_16, %c0_17] : memref<1x4x128xf32, #tpu.memory_space<vmem>>, vector<1x4x128xf32>
    %18 = vector.shape_cast %17 : vector<1x4x128xf32> to vector<4x128xf32>
    %19 = vector.shape_cast %16 : vector<4x128xf32> to vector<1x4x128xf32>
    tpu.vector_store %arg7[%c0_15, %c0_16, %c0_17], %19 {strides = array<i32>} : memref<1x4x128xf32, #tpu.memory_space<vmem>>, vector<1x4x128xf32>,
    return
  }
  func.func @transform_0(%arg0: i32) -> (i32, i32, i32) {
    %c0_i32 = arith.constant 0 : i32
    %c0_i32_0 = arith.constant 0 : i32
    %c0_i32_1 = arith.constant 0 : i32
    return %arg0, %c0_i32, %c0_i32_0 : i32, i32, i32
  }
  func.func @transform_1(%arg0: i32) -> (i32, i32) {
    %c0_i32 = arith.constant 0 : i32
    %c0_i32_0 = arith.constant 0 : i32
    %c0_i32_1 = arith.constant 0 : i32
    return %c0_i32, %c0_i32_0 : i32, i32
  }
  func.func @transform_2(%arg0: i32) -> (i32, i32) {
    %c0_i32 = arith.constant 0 : i32
    %c0_i32_0 = arith.constant 0 : i32
    %c0_i32_1 = arith.constant 0 : i32
    return %c0_i32, %c0_i32_0 : i32, i32
  }
  func.func @transform_3(%arg0: i32) -> (i32, i32) {
    %c0_i32 = arith.constant 0 : i32
    %c0_i32_0 = arith.constant 0 : i32
    %c0_i32_1 = arith.constant 0 : i32
    return %c0_i32, %c0_i32_0 : i32, i32
  }
  func.func @transform_4(%arg0: i32) -> (i32, i32) {
    %c0_i32 = arith.constant 0 : i32
    %c0_i32_0 = arith.constant 0 : i32
    %c0_i32_1 = arith.constant 0 : i32
    return %c0_i32, %c0_i32_0 : i32, i32
  }
  func.func @transform_5(%arg0: i32) -> (i32, i32) {
    %c0_i32 = arith.constant 0 : i32
    %c0_i32_0 = arith.constant 0 : i32
    %c0_i32_1 = arith.constant 0 : i32
    return %c0_i32, %c0_i32_0 : i32, i32
  }
  func.func @transform_6(%arg0: i32) -> (i32, i32, i32) {
    %c0_i32 = arith.constant 0 : i32
    %c0_i32_0 = arith.constant 0 : i32
    %c0_i32_1 = arith.constant 0 : i32
    return %arg0, %c0_i32, %c0_i32_0 : i32, i32, i32
  }
}

</mosaic_0001>

<llo_original>
// kernel: tpu_custom_call.1
$region0: #{tpu_custom_call.1}
  #allocation0 [shape = 'u32[]', space=smem, size = 0x4, offset = 0x4, fixed_abs, tag = 'smem constant byte address 0x4 - core index']
  #allocation1 [shape = 'u32[144,128]{1,0:T(1,128)}', space=vmem, size = 0x12000, scoped, tag = 'internal scratch']
  %s0 = inlined_call_operand.vmem [shape: bf16[2,64,40], index: 0, kind: input, shape index: {}]
  %s1 = inlined_call_operand.vmem [shape: bf16[40,128], index: 1, kind: input, shape index: {}]
  %s2 = inlined_call_operand.vmem [shape: f32[1,128], index: 2, kind: input, shape index: {}]
  %s3 = inlined_call_operand.vmem [shape: f32[4,64], index: 3, kind: input, shape index: {}]
  %s4 = inlined_call_operand.vmem [shape: bf16[128,128], index: 4, kind: input, shape index: {}]
  %s5 = inlined_call_operand.vmem [shape: f32[1,128], index: 5, kind: input, shape index: {}]
  %s6 = inlined_call_operand.hbm [shape: f32[2,4,128], index: 6, kind: output, shape index: {}]
  %s7 = sld [smem:[#allocation0]]
  $region57: #{tpu_custom_call.1} parent=0
    _
  %s9 = ssub.s32 1, %s7
  %s10 = scalar_select 0, %s9, %s7
  $region1: #{tpu_custom_call.1} parent=0
    #allocation2 [shape = 'u8[4096]{0}', space=vmem, size = 0x1000, scoped, tag = 'output window, operand 0']
    #allocation3 [shape = 's32[2]{0}', space=sflag, size = 0x8, scoped, tag = 'scoped memory for tpu_custom_call.1']
    %11 = vsyncpa [#allocation3], 0
    %s12 = scalar_lea.sflag [#allocation3], 1
    %13 = vsyncpa %s12, 0
    loop: start=0, step=1, limit=4
    $region2: #{tpu_custom_call.1} parent=1 // loop_pre_header
      _
    $region3: #{tpu_custom_call.1} parent=1 // loop_header
      %s15 = sphi 0, %s19
      %p16 = scmp.ge.s32.totalorder %s15, 4
      %s25 = sphi 0, %s27
      %s28 = sphi 0, %s25
      %s29 = sphi 0, %s28
      %s45 = sphi 0, %s29
      %s49 = sphi 0, %s49
      %s51 = sphi 0, %s49
      %s52 = sphi 0, %s51
      %s66 = sphi 0, %s52
      %s70 = sphi 0, %s70
      %s72 = sphi 0, %s70
      %s73 = sphi 0, %s72
      %s87 = sphi 0, %s73
      %s91 = sphi 0, %s91
      %s93 = sphi 0, %s91
      %s94 = sphi 0, %s93
      %s108 = sphi 0, %s94
      %s112 = sphi 0, %s112
      %s114 = sphi 0, %s112
      %s115 = sphi 0, %s114
      %s129 = sphi 0, %s115
      %s133 = sphi 0, %s133
      %s135 = sphi 0, %s133
      %s136 = sphi 0, %s135
      %s150 = sphi 0, %s136
      %s156 = sphi 0, %s158
      %s159 = sphi 0, %s156
      %s160 = sphi 0, %s159
      %s176 = sphi 0, %s160
    $region4: #{tpu_custom_call.1} parent=1 // loop_header_branch
      %18 = sbr.rel (%p16) target = $region8
    $region5: #{tpu_custom_call.1} parent=1 // loop_body
      %s20 = ssub.s32 %s15, 1
      %s21 = ssub.s32 %s15, 2
      %s22 = sadd.s32 %s15, 1
      %s23 = ssub.s32 %s15, %s22
      %p24 = scmp.eq.s32.totalorder %s23, 0
      %s26 = sadd.s32 %s25, 1
      %s27 = scalar_select %p24, %s25, %s26
      %p30 = pneg %p24
      %p31 = scmp.eq.s32.totalorder %s15, 1
      %p32 = por %p30, %p31
      %p33 = scmp.ne.s32.totalorder %s25, %s28
      %p34 = scmp.eq.s32.totalorder %s15, 0
      %p35 = por %p33, %p34
      %p36 = scmp.ne.s32.totalorder %s25, %s28
      %p37 = scmp.eq.s32.totalorder %s20, 1
      %p38 = por %p36, %p37
      %p39 = scmp.ne.s32.totalorder %s28, %s29
      %p40 = scmp.eq.s32.totalorder %s20, 0
      %p41 = por %p39, %p40
      %p42 = scmp.ne.s32.totalorder %s28, %s29
      %p43 = scmp.eq.s32.totalorder %s21, 1
      %p44 = por %p42, %p43
      %p46 = scmp.ne.s32.totalorder %s29, %s45
      %p47 = scmp.eq.s32.totalorder %s21, 0
      %p48 = por %p46, %p47
      %s50 = sadd.s32 %s49, 1
      %p53 = scmp.eq.s32.totalorder %s15, 1
      %p54 = scmp.ne.s32.totalorder %s49, %s51
      %p55 = scmp.eq.s32.totalorder %s15, 0
      %p56 = por %p54, %p55
      %p57 = scmp.ne.s32.totalorder %s49, %s51
      %p58 = scmp.eq.s32.totalorder %s20, 1
      %p59 = por %p57, %p58
      %p60 = scmp.ne.s32.totalorder %s51, %s52
      %p61 = scmp.eq.s32.totalorder %s20, 0
      %p62 = por %p60, %p61
      %p63 = scmp.ne.s32.totalorder %s51, %s52
      %p64 = scmp.eq.s32.totalorder %s21, 1
      %p65 = por %p63, %p64
      %p67 = scmp.ne.s32.totalorder %s52, %s66
      %p68 = scmp.eq.s32.totalorder %s21, 0
      %p69 = por %p67, %p68
      %s71 = sadd.s32 %s70, 1
      %p74 = scmp.eq.s32.totalorder %s15, 1
      %p75 = scmp.ne.s32.totalorder %s70, %s72
      %p76 = scmp.eq.s32.totalorder %s15, 0
      %p77 = por %p75, %p76
      %p78 = scmp.ne.s32.totalorder %s70, %s72
      %p79 = scmp.eq.s32.totalorder %s20, 1
      %p80 = por %p78, %p79
      %p81 = scmp.ne.s32.totalorder %s72, %s73
      %p82 = scmp.eq.s32.totalorder %s20, 0
      %p83 = por %p81, %p82
      %p84 = scmp.ne.s32.totalorder %s72, %s73
      %p85 = scmp.eq.s32.totalorder %s21, 1
      %p86 = por %p84, %p85
      %p88 = scmp.ne.s32.totalorder %s73, %s87
      %p89 = scmp.eq.s32.totalorder %s21, 0
      %p90 = por %p88, %p89
      %s92 = sadd.s32 %s91, 1
      %p95 = scmp.eq.s32.totalorder %s15, 1
      %p96 = scmp.ne.s32.totalorder %s91, %s93
      %p97 = scmp.eq.s32.totalorder %s15, 0
      %p98 = por %p96, %p97
      %p99 = scmp.ne.s32.totalorder %s91, %s93
      %p100 = scmp.eq.s32.totalorder %s20, 1
      %p101 = por %p99, %p100
      %p102 = scmp.ne.s32.totalorder %s93, %s94
      %p103 = scmp.eq.s32.totalorder %s20, 0
      %p104 = por %p102, %p103
      %p105 = scmp.ne.s32.totalorder %s93, %s94
      %p106 = scmp.eq.s32.totalorder %s21, 1
      %p107 = por %p105, %p106
      %p109 = scmp.ne.s32.totalorder %s94, %s108
      %p110 = scmp.eq.s32.totalorder %s21, 0
      %p111 = por %p109, %p110
      %s113 = sadd.s32 %s112, 1
      %p116 = scmp.eq.s32.totalorder %s15, 1
      %p117 = scmp.ne.s32.totalorder %s112, %s114
      %p118 = scmp.eq.s32.totalorder %s15, 0
      %p119 = por %p117, %p118
      %p120 = scmp.ne.s32.totalorder %s112, %s114
      %p121 = scmp.eq.s32.totalorder %s20, 1
      %p122 = por %p120, %p121
      %p123 = scmp.ne.s32.totalorder %s114, %s115
      %p124 = scmp.eq.s32.totalorder %s20, 0
      %p125 = por %p123, %p124
      %p126 = scmp.ne.s32.totalorder %s114, %s115
      %p127 = scmp.eq.s32.totalorder %s21, 1
      %p128 = por %p126, %p127
      %p130 = scmp.ne.s32.totalorder %s115, %s129
      %p131 = scmp.eq.s32.totalorder %s21, 0
      %p132 = por %p130, %p131
      %s134 = sadd.s32 %s133, 1
      %p137 = scmp.eq.s32.totalorder %s15, 1
      %p138 = scmp.ne.s32.totalorder %s133, %s135
      %p139 = scmp.eq.s32.totalorder %s15, 0
      %p140 = por %p138, %p139
      %p141 = scmp.ne.s32.totalorder %s133, %s135
      %p142 = scmp.eq.s32.totalorder %s20, 1
      %p143 = por %p141, %p142
      %p144 = scmp.ne.s32.totalorder %s135, %s136
      %p145 = scmp.eq.s32.totalorder %s20, 0
      %p146 = por %p144, %p145
      %p147 = scmp.ne.s32.totalorder %s135, %s136
      %p148 = scmp.eq.s32.totalorder %s21, 1
      %p149 = por %p147, %p148
      %p151 = scmp.ne.s32.totalorder %s136, %s150
      %p152 = scmp.eq.s32.totalorder %s21, 0
      %p153 = por %p151, %p152
      %s154 = ssub.s32 %s15, %s22
      %p155 = scmp.eq.s32.totalorder %s154, 0
      %s157 = sadd.s32 %s156, 1
      %s158 = scalar_select %p155, %s156, %s157
      %p161 = pneg %p155
      %p162 = scmp.eq.s32.totalorder %s15, 1
      %p163 = por %p161, %p162
      %p164 = scmp.ne.s32.totalorder %s156, %s159
      %p165 = scmp.eq.s32.totalorder %s15, 0
      %p166 = por %p164, %p165
      %p167 = scmp.ne.s32.totalorder %s156, %s159
      %p168 = scmp.eq.s32.totalorder %s20, 1
      %p169 = por %p167, %p168
      %p170 = scmp.ne.s32.totalorder %s159, %s160
      %p171 = scmp.eq.s32.totalorder %s20, 0
      %p172 = por %p170, %p171
      %p173 = scmp.ne.s32.totalorder %s159, %s160
      %p174 = scmp.eq.s32.totalorder %s21, 1
      %p175 = por %p173, %p174
      %p177 = scmp.ne.s32.totalorder %s160, %s176
      %p178 = scmp.eq.s32.totalorder %s21, 0
      %p179 = por %p177, %p178
      %p180 = scmp.le.s32.totalorder 1, %s15
      %p181 = scmp.lt.s32.totalorder %s15, 3
      %p182 = pnand %p180, %p181
      %p183 = pneg %p182
      // Predicated region
      $region9: #{tpu_custom_call.1} parent=5 // pred_check
        _
      $region10: #{tpu_custom_call.1} parent=5 // pred_check_branch
        %185 = sbr.rel (%p182) target = $region12
      $region11: #{tpu_custom_call.1} parent=5 // pred_region
        %s186 = ssub.s32 %s15, 1
        // Predicated region
        $region13: #{tpu_custom_call.1} parent=11 // pred_check
          %p187 = pneg %p62
        $region14: #{tpu_custom_call.1} parent=11 // pred_check_branch
          %189 = sbr.rel (%p187) target = $region16
        $region15: #{tpu_custom_call.1} parent=11 // pred_region
          _
        $region16: #{tpu_custom_call.1} parent=11 // pred_fallthru
          _
        // Predicated region
        $region17: #{tpu_custom_call.1} parent=11 // pred_check
          %p190 = pneg %p83
        $region18: #{tpu_custom_call.1} parent=11 // pred_check_branch
          %192 = sbr.rel (%p190) target = $region20
        $region19: #{tpu_custom_call.1} parent=11 // pred_region
          _
        $region20: #{tpu_custom_call.1} parent=11 // pred_fallthru
          _
        // Predicated region
        $region21: #{tpu_custom_call.1} parent=11 // pred_check
          %p193 = pneg %p104
        $region22: #{tpu_custom_call.1} parent=11 // pred_check_branch
          %195 = sbr.rel (%p193) target = $region24
        $region23: #{tpu_custom_call.1} parent=11 // pred_region
          _
        $region24: #{tpu_custom_call.1} parent=11 // pred_fallthru
          _
        // Predicated region
        $region25: #{tpu_custom_call.1} parent=11 // pred_check
          %p196 = pneg %p125
        $region26: #{tpu_custom_call.1} parent=11 // pred_check_branch
          %198 = sbr.rel (%p196) target = $region28
        $region27: #{tpu_custom_call.1} parent=11 // pred_region
          _
        $region28: #{tpu_custom_call.1} parent=11 // pred_fallthru
          _
        // Predicated region
        $region29: #{tpu_custom_call.1} parent=11 // pred_check
          %p199 = pneg %p146
        $region30: #{tpu_custom_call.1} parent=11 // pred_check_branch
          %201 = sbr.rel (%p199) target = $region32
        $region31: #{tpu_custom_call.1} parent=11 // pred_region
          _
        $region32: #{tpu_custom_call.1} parent=11 // pred_fallthru
          _
      $region12: #{tpu_custom_call.1} parent=5 // pred_fallthru
        _
      %p202 = scmp.lt.s32.totalorder %s15, 2
      // Predicated region
      $region33: #{tpu_custom_call.1} parent=5 // pred_check
        %p203 = pneg %p202
      $region34: #{tpu_custom_call.1} parent=5 // pred_check_branch
        %205 = sbr.rel (%p203) target = $region36
      $region35: #{tpu_custom_call.1} parent=5 // pred_region
        // Predicated region
        $region37: #{tpu_custom_call.1} parent=35 // pred_check
          %p206 = pneg %p35
        $region38: #{tpu_custom_call.1} parent=35 // pred_check_branch
          %208 = sbr.rel (%p206) target = $region40
        $region39: #{tpu_custom_call.1} parent=35 // pred_region
          %p209 = scmp.lt.s32.totalorder %s15, 1
          %s210 = scalar_select %p209, %s15, 1
          %s211 = smul.addr %s210, 8
          %s212 = smul.addr %s211, 4
          %s213 = scalar_lea.vmem %s0, %s212
        $region40: #{tpu_custom_call.1} parent=35 // pred_fallthru
          _
      $region36: #{tpu_custom_call.1} parent=5 // pred_fallthru
        _
      %p214 = scmp.le.s32.totalorder 1, %s15
      %p215 = scmp.lt.s32.totalorder %s15, 3
      %p216 = pnand %p214, %p215
      %p217 = pneg %p216
      // Predicated region
      $region41: #{tpu_custom_call.1} parent=5 // pred_check
        _
      $region42: #{tpu_custom_call.1} parent=5 // pred_check_branch
        %219 = sbr.rel (%p216) target = $region44
      $region43: #{tpu_custom_call.1} parent=5 // pred_region
        %s220 = ssub.s32 %s15, 1
        %p221 = scmp.lt.s32.totalorder %s20, 1
        %s222 = scalar_select %p221, %s20, 1
        %s223 = smul.addr %s222, 8
        %s224 = smul.addr %s223, 4
        %s225 = scalar_lea.vmem %s0, %s224
        %p226 = pneg %p41
        %p227 = pneg %p38
        %p228 = pneg %p62
        %p229 = pneg %p59
        %p230 = pneg %p83
        %p231 = pneg %p80
        %p232 = pneg %p104
        %p233 = pneg %p101
        %p234 = pneg %p125
        %p235 = pneg %p122
        %p236 = pneg %p146
        %p237 = pneg %p143
        %p238 = pneg %p172
        %p239 = pneg %p169
        %s240 = sand.u32 %s159, 1
        %s241 = scalar_lea.sflag [#allocation3], %s240
        %s242 = sand.u32 %s159, 1
        %s243 = smul.addr %s242, 4
        %s244 = scalar_lea.vmem [#allocation2], %s243
        %p245 = scmp.lt.s32.totalorder %s20, 1
        %s246 = scalar_select %p245, %s20, 1
        %s247 = smul.addr %s246, 8
        %s248 = smul.addr %s247, 4
        %s249 = scalar_lea.vmem %s0, %s248
        %v251 = vld [vmem:[%s249] sm:$0xf]
        %v252 = vld [vmem:[%s249 + $0x4] sm:$0xf]
        %v253 = vld [vmem:[%s249 + $0x8] sm:$0xf]
        %v254 = vld [vmem:[%s249 + $0xc] sm:$0xf]
        %v255 = vld [vmem:[%s249 + $0x10] sm:$0xf]
        %v256 = vld [vmem:[%s249 + $0x14] sm:$0xf]
        %v257 = vld [vmem:[%s249 + $0x18] sm:$0xf]
        %v258 = vld [vmem:[%s249 + $0x1c] sm:$0xf]
        %v259 = vld [vmem:[%s1] sm:$0xf]
        %v260 = vld [vmem:[%s1 + $0x4] sm:$0xf]
        %v261 = vld [vmem:[%s1 + $0x8] sm:$0xf]
        %v262 = vld [vmem:[%s1 + $0xc] sm:$0xf]
        %v263 = vld [vmem:[%s1 + $0x10] sm:$0xf]
        %v264 = vld [vmem:[%s2] sm:$0x1]
        %v266 = vlaneseq
        %v267 = vshrl.u32 %v266, 7
        %v268 = vsub.s32 0, %v267
        %v269 = vrot.slane %v264, %v268
        %v279 = vunpack.c.l.b16 %v251
        %v280 = vunpack.c.l.b16 %v252
        %v281 = vunpack.c.l.b16 %v253
        %v282 = vunpack.c.l.b16 %v254
        %v283 = vunpack.c.l.b16 %v255
        %v284 = vunpack.c.l.b16 %v256
        %v285 = vunpack.c.l.b16 %v257
        %v286 = vunpack.c.l.b16 %v258
        %v287 = vpack.c.b16 %v280, %v279
        %v288 = vpack.c.b16 %v282, %v281
        %v289 = vpack.c.b16 %v284, %v283
        %v290 = vpack.c.b16 %v286, %v285
        %v296 = vunpack.c.l.b16 %v259
        %v297 = vunpack.c.l.b16 %v260
        %v298 = vunpack.c.l.b16 %v261
        %v299 = vunpack.c.l.b16 %v262
        %v300 = vunpack.c.l.b16 %v263
        %v301 = vpack.c.b16 %v297, %v296
        %v302 = vpack.c.b16 %v299, %v298
        %v303 = vpack.c.b16 %v300, %v300
        %vm306 = vcmask 326656
        %v308 = vsel %vm306, %v287, 0
        %v311 = vsel %vm306, %v288, 0
        %v314 = vsel %vm306, %v289, 0
        %v317 = vsel %vm306, %v290, 0
        %vm319 = vcmask 1043456
        %v321 = vsel %vm319, %v303, 0
        %323 = vmatprep.subr.bf16.mxu0 0
        %324 = vmatpush1.bf16.msra.mxu0 0
        %325 = vmatprep.subr.bf16.mxu0 0
        %326 = vmatpush1.bf16.msra.mxu0 0
        %327 = vmatprep.subr.bf16.mxu0 0
        %328 = vmatpush1.bf16.msra.mxu0 0
        %329 = vmatprep.subr.bf16.mxu0 0
        %330 = vmatpush1.bf16.msra.mxu0 0
        %331 = vmatprep.subr.bf16.mxu0 0
        %332 = vmatpush1.bf16.msra.mxu0 0
        %333 = vmatprep.subr.bf16.mxu0 0
        %334 = vmatpush1.bf16.msra.mxu0 %v321
        %335 = vmatprep.subr.bf16.mxu0 0
        %336 = vmatpush1.bf16.msra.mxu0 %v302
        %337 = vmatprep.subr.bf16.mxu0 0
        %338 = vmatpush1.bf16.msra.mxu0 %v301
        %339 = vmatprep.subr.bf16.mxu0 0
        %340 = vmatpush2.bf16.msra.mxu0 0
        %341 = vmatprep.subr.bf16.mxu0 0
        %342 = vmatpush2.bf16.msra.mxu0 0
        %343 = vmatprep.subr.bf16.mxu0 0
        %344 = vmatpush2.bf16.msra.mxu0 0
        %345 = vmatprep.subr.bf16.mxu0 0
        %346 = vmatpush2.bf16.msra.mxu0 0
        %347 = vmatprep.subr.bf16.mxu0 0
        %348 = vmatpush2.bf16.msra.mxu0 0
        %349 = vmatprep.subr.bf16.mxu0 0
        %350 = vmatpush2.bf16.msra.mxu0 0
        %351 = vmatprep.subr.bf16.mxu0 0
        %352 = vmatpush2.bf16.msra.mxu0 0
        %353 = vmatprep.subr.bf16.mxu0 0
        %354 = vmatpush2.bf16.msra.mxu0 0
        %355 = vmatprep.mubr.bf16.mxu0 0
        %356 = vmatmul.mubr.bf16.gmra.mxu0 %v308
        %v357 = vpop.f32.mrf.mxu0
        %v358 = vadd.f32 %v269, %v357
        %v359 = vpop.f32.mrf.mxu0
        %v360 = vpop.f32.mrf.mxu0
        %v361 = vadd.f32 %v269, %v360
        %v362 = vpop.f32.mrf.mxu0
        %363 = vmatprep.mubr.bf16.mxu0 0
        %364 = vmatmul.mubr.bf16.gmra.mxu0 %v311
        %v365 = vpop.f32.mrf.mxu0
        %v366 = vadd.f32 %v269, %v365
        %v367 = vpop.f32.mrf.mxu0
        %v368 = vpop.f32.mrf.mxu0
        %v369 = vadd.f32 %v269, %v368
        %v370 = vpop.f32.mrf.mxu0
        %371 = vmatprep.mubr.bf16.mxu0 0
        %372 = vmatmul.mubr.bf16.gmra.mxu0 %v314
        %v373 = vpop.f32.mrf.mxu0
        %v374 = vadd.f32 %v269, %v373
        %v375 = vpop.f32.mrf.mxu0
        %v376 = vpop.f32.mrf.mxu0
        %v377 = vadd.f32 %v269, %v376
        %v378 = vpop.f32.mrf.mxu0
        %379 = vmatprep.mubr.bf16.mxu0 0
        %380 = vmatmul.mubr.bf16.gmra.mxu0 %v317
        %v381 = vpop.f32.mrf.mxu0
        %v382 = vadd.f32 %v269, %v381
        %v383 = vpop.f32.mrf.mxu0
        %v384 = vpop.f32.mrf.mxu0
        %v385 = vadd.f32 %v269, %v384
        %v386 = vpop.f32.mrf.mxu0
        %387 = vdwg.mxu0
        %v388 = vmax.f32 %v358, 0.0
        %v389 = vmax.f32 %v361, 0.0
        %v390 = vmax.f32 %v366, 0.0
        %v391 = vmax.f32 %v369, 0.0
        %v392 = vmax.f32 %v374, 0.0
        %v393 = vmax.f32 %v377, 0.0
        %v394 = vmax.f32 %v382, 0.0
        %v395 = vmax.f32 %v385, 0.0
        %v396 = vld [vmem:[%s3] sm:$0xf]
        %vm397 = vcmask 523264
        %v399 = vsel %vm397, %v396, 0
        %401 = vmatprep.subr.mxu0 0.0
        %402 = vmatpush1.msra.mxu0 0.0
        %403 = vmatprep.subr.mxu0 0.0
        %404 = vmatpush1.msra.mxu0 0.0
        %405 = vmatprep.subr.mxu0 0.0
        %406 = vmatpush1.msra.mxu0 0.0
        %407 = vmatprep.subr.mxu0 0.0
        %408 = vmatpush1.msra.mxu0 0.0
        %409 = vmatprep.subr.mxu0 0.0
        %410 = vmatpush1.msra.mxu0 0.0
        %411 = vmatprep.subr.mxu0 0.0
        %412 = vmatpush1.msra.mxu0 0.0
        %413 = vmatprep.subr.mxu0 0.0
        %414 = vmatpush1.msra.mxu0 0.0
        %415 = vmatprep.subr.mxu0 0.0
        %416 = vmatpush1.msra.mxu0 0.0
        %417 = vmatprep.subr.mxu0 0.0
        %418 = vmatpush1.msra.mxu0 %v395
        %419 = vmatprep.subr.mxu0 0.0
        %420 = vmatpush1.msra.mxu0 %v394
        %421 = vmatprep.subr.mxu0 0.0
        %422 = vmatpush1.msra.mxu0 %v393
        %423 = vmatprep.subr.mxu0 0.0
        %424 = vmatpush1.msra.mxu0 %v392
        %425 = vmatprep.subr.mxu0 0.0
        %426 = vmatpush1.msra.mxu0 %v391
        %427 = vmatprep.subr.mxu0 0.0
        %428 = vmatpush1.msra.mxu0 %v390
        %429 = vmatprep.subr.mxu0 0.0
        %430 = vmatpush1.msra.mxu0 %v389
        %431 = vmatprep.subr.mxu0 0.0
        %432 = vmatpush1.msra.mxu0 %v388
        %433 = vmatprep.subr.mxu0 0.0
        %434 = vmatpush2.msra.mxu0 0.0
        %435 = vmatprep.subr.mxu0 0.0
        %436 = vmatpush2.msra.mxu0 0.0
        %437 = vmatprep.subr.mxu0 0.0
        %438 = vmatpush2.msra.mxu0 0.0
        %439 = vmatprep.subr.mxu0 0.0
        %440 = vmatpush2.msra.mxu0 0.0
        %441 = vmatprep.subr.mxu0 0.0
        %442 = vmatpush2.msra.mxu0 0.0
        %443 = vmatprep.subr.mxu0 0.0
        %444 = vmatpush2.msra.mxu0 0.0
        %445 = vmatprep.subr.mxu0 0.0
        %446 = vmatpush2.msra.mxu0 0.0
        %447 = vmatprep.subr.mxu0 0.0
        %448 = vmatpush2.msra.mxu0 0.0
        %449 = vmatprep.subr.mxu0 0.0
        %450 = vmatpush2.msra.mxu0 0.0
        %451 = vmatprep.subr.mxu0 0.0
        %452 = vmatpush2.msra.mxu0 0.0
        %453 = vmatprep.subr.mxu0 0.0
        %454 = vmatpush2.msra.mxu0 0.0
        %455 = vmatprep.subr.mxu0 0.0
        %456 = vmatpush2.msra.mxu0 0.0
        %457 = vmatprep.subr.mxu0 0.0
        %458 = vmatpush2.msra.mxu0 0.0
        %459 = vmatprep.subr.mxu0 0.0
        %460 = vmatpush2.msra.mxu0 0.0
        %461 = vmatprep.subr.mxu0 0.0
        %462 = vmatpush2.msra.mxu0 0.0
        %463 = vmatprep.subr.mxu0 0.0
        %464 = vmatpush2.msra.mxu0 0.0
        %465 = vmatprep.mubr.f32.mxu0 0.0
        %466 = vmatmul.mubr.f32.gmra.mxu0 %v399
        %v467 = vpop.f32.mrf.mxu0
        %v468 = vadd.f32 0.0, %v467
        %v469 = vpop.f32.mrf.mxu0
        %470 = vdwg.mxu0
        %v471 = vpack.c.bf16 %v468, %v468
        %v472 = vld [vmem:[%s4] sm:$0xf]
        %v473 = vld [vmem:[%s4 + $0x4] sm:$0xf]
        %v474 = vld [vmem:[%s4 + $0x8] sm:$0xf]
        %v475 = vld [vmem:[%s4 + $0xc] sm:$0xf]
        %v476 = vld [vmem:[%s4 + $0x10] sm:$0xf]
        %v477 = vld [vmem:[%s4 + $0x14] sm:$0xf]
        %v478 = vld [vmem:[%s4 + $0x18] sm:$0xf]
        %v479 = vld [vmem:[%s4 + $0x1c] sm:$0xf]
        %v480 = vld [vmem:[%s4 + $0x20] sm:$0xf]
        %v481 = vld [vmem:[%s4 + $0x24] sm:$0xf]
        %v482 = vld [vmem:[%s4 + $0x28] sm:$0xf]
        %v483 = vld [vmem:[%s4 + $0x2c] sm:$0xf]
        %v484 = vld [vmem:[%s4 + $0x30] sm:$0xf]
        %v485 = vld [vmem:[%s4 + $0x34] sm:$0xf]
        %v486 = vld [vmem:[%s4 + $0x38] sm:$0xf]
        %v487 = vld [vmem:[%s4 + $0x3c] sm:$0xf]
        %v488 = vld [vmem:[%s5] sm:$0x1]
        %v490 = vlaneseq
        %v491 = vshrl.u32 %v490, 7
        %v492 = vsub.s32 0, %v491
        %v493 = vrot.slane %v488, %v492
        %v511 = vunpack.c.l.b16 %v472
        %v512 = vunpack.c.l.b16 %v473
        %v513 = vunpack.c.l.b16 %v474
        %v514 = vunpack.c.l.b16 %v475
        %v515 = vunpack.c.l.b16 %v476
        %v516 = vunpack.c.l.b16 %v477
        %v517 = vunpack.c.l.b16 %v478
        %v518 = vunpack.c.l.b16 %v479
        %v519 = vunpack.c.l.b16 %v480
        %v520 = vunpack.c.l.b16 %v481
        %v521 = vunpack.c.l.b16 %v482
        %v522 = vunpack.c.l.b16 %v483
        %v523 = vunpack.c.l.b16 %v484
        %v524 = vunpack.c.l.b16 %v485
        %v525 = vunpack.c.l.b16 %v486
        %v526 = vunpack.c.l.b16 %v487
        %v527 = vpack.c.b16 %v512, %v511
        %v528 = vpack.c.b16 %v514, %v513
        %v529 = vpack.c.b16 %v516, %v515
        %v530 = vpack.c.b16 %v518, %v517
        %v531 = vpack.c.b16 %v520, %v519
        %v532 = vpack.c.b16 %v522, %v521
        %v533 = vpack.c.b16 %v524, %v523
        %v534 = vpack.c.b16 %v526, %v525
        %543 = vmatprep.subr.bf16.mxu0 0
        %544 = vmatpush1.bf16.msra.mxu0 %v534
        %545 = vmatprep.subr.bf16.mxu0 0
        %546 = vmatpush1.bf16.msra.mxu0 %v533
        %547 = vmatprep.subr.bf16.mxu0 0
        %548 = vmatpush1.bf16.msra.mxu0 %v532
        %549 = vmatprep.subr.bf16.mxu0 0
        %550 = vmatpush1.bf16.msra.mxu0 %v531
        %551 = vmatprep.subr.bf16.mxu0 0
        %552 = vmatpush1.bf16.msra.mxu0 %v530
        %553 = vmatprep.subr.bf16.mxu0 0
        %554 = vmatpush1.bf16.msra.mxu0 %v529
        %555 = vmatprep.subr.bf16.mxu0 0
        %556 = vmatpush1.bf16.msra.mxu0 %v528
        %557 = vmatprep.subr.bf16.mxu0 0
        %558 = vmatpush1.bf16.msra.mxu0 %v527
        %559 = vmatprep.subr.bf16.mxu0 0
        %560 = vmatpush2.bf16.msra.mxu0 0
        %561 = vmatprep.subr.bf16.mxu0 0
        %562 = vmatpush2.bf16.msra.mxu0 0
        %563 = vmatprep.subr.bf16.mxu0 0
        %564 = vmatpush2.bf16.msra.mxu0 0
        %565 = vmatprep.subr.bf16.mxu0 0
        %566 = vmatpush2.bf16.msra.mxu0 0
        %567 = vmatprep.subr.bf16.mxu0 0
        %568 = vmatpush2.bf16.msra.mxu0 0
        %569 = vmatprep.subr.bf16.mxu0 0
        %570 = vmatpush2.bf16.msra.mxu0 0
        %571 = vmatprep.subr.bf16.mxu0 0
        %572 = vmatpush2.bf16.msra.mxu0 0
        %573 = vmatprep.subr.bf16.mxu0 0
        %574 = vmatpush2.bf16.msra.mxu0 0
        %575 = vmatprep.mubr.bf16.mxu0 0
        %576 = vmatmul.mubr.bf16.gmra.mxu0 %v471
        %v577 = vpop.f32.mrf.mxu0
        %v578 = vadd.f32 %v493, %v577
        %v579 = vpop.f32.mrf.mxu0
        %v580 = vpop.f32.mrf.mxu0
        %v581 = vpop.f32.mrf.mxu0
        %582 = vdwg.mxu0
        %583 = vst [vmem:[%s244] sm:$0xf] %v578
        %s584 = sand.u32 %s159, 1
        %s585 = scalar_lea.sflag [#allocation3], %s584
        %s586 = sand.u32 %s159, 1
        %s587 = smul.addr %s586, 4
        %s588 = scalar_lea.vmem [#allocation2], %s587
        // Predicated region
        $region45: #{tpu_custom_call.1} parent=43 // pred_check
          %p589 = pneg %p169
        $region46: #{tpu_custom_call.1} parent=43 // pred_check_branch
          %591 = sbr.rel (%p589) target = $region48
        $region47: #{tpu_custom_call.1} parent=43 // pred_region
          %s593 = ssub.s32 64, 64
          %594 = vsyncadd %s585, %s593
          %s595 = smul.addr %s20, 64
          %s596 = scalar_lea.hbm %s6, %s595
          %s598 = sshll.u32 %s588, 4
          %s599 = int_to_ptr.vmem [resolvable:$true] %s598
          %601 = dma.vmem_to_hbm [thread:$0]  %s599, 64, %s596, %s585
        $region48: #{tpu_custom_call.1} parent=43 // pred_fallthru
          _
      $region44: #{tpu_custom_call.1} parent=5 // pred_fallthru
        _
      %p602 = scmp.le.s32.totalorder 2, %s15
      // Predicated region
      $region49: #{tpu_custom_call.1} parent=5 // pred_check
        %p603 = pneg %p602
      $region50: #{tpu_custom_call.1} parent=5 // pred_check_branch
        %605 = sbr.rel (%p603) target = $region52
      $region51: #{tpu_custom_call.1} parent=5 // pred_region
        %s606 = ssub.s32 %s15, 2
        // Predicated region
        $region53: #{tpu_custom_call.1} parent=51 // pred_check
          %p607 = pneg %p175
        $region54: #{tpu_custom_call.1} parent=51 // pred_check_branch
          %609 = sbr.rel (%p607) target = $region56
        $region55: #{tpu_custom_call.1} parent=51 // pred_region
          %s610 = sand.u32 %s160, 1
          %s611 = scalar_lea.sflag [#allocation3], %s610
          %s612 = sand.u32 %s160, 1
          %s613 = smul.addr %s612, 4
          %s614 = scalar_lea.vmem [#allocation2], %s613
          %615 = dma.done %s611, 64
        $region56: #{tpu_custom_call.1} parent=51 // pred_fallthru
          _
      $region52: #{tpu_custom_call.1} parent=5 // pred_fallthru
        _
    $region6: #{tpu_custom_call.1} parent=1 // loop_footer
      %s19 = sadd.s32 1, %s15
    $region7: #{tpu_custom_call.1} parent=1 // loop_footer_branch
      %14 = sbr.rel target = $region3
    $region8: #{tpu_custom_call.1} parent=1 // loop_exit
      _
    %616 = vsyncpa [#allocation3], 1
    %s617 = scalar_lea.sflag [#allocation3], 1
    %618 = vsyncpa %s617, 1

</llo_original>
